<compile_context>
chip_gen: v7x
topology: tpu7x:2x2x1
jax: 0.10.0
libtpu: 0.0.40
codegen_flags: <defaults>
</compile_context>

<pallas_src>
import jax
import jax.numpy as jnp
from jax.experimental import pallas as pl
from jax.experimental.pallas import tpu as pltpu


def _cdiv(a, b):
    return -(-a // b)


def _round_up(x, n):
    return _cdiv(x, n) * n


def _vmem_capacity_bytes():
    try:
        info = pltpu.get_tpu_info()
        cap = getattr(info, "vmem_capacity_bytes", None)
        if cap:
            return int(cap)
    except Exception:
        pass
    return 64 << 20  # conservative fallback: assume v7x per-TensorCore VMEM


# --------------------------------------------------------------------------
# Kernel bodies
# --------------------------------------------------------------------------
def _mlp_kernel_fused(x_ref, w1_ref, b1_ref, w2_ref, b2_ref, o_ref):
    """num_k == 1: weights are VMEM-resident, no accumulator scratch needed."""
    # x_ref:  (tile_m, c_in)   w1_ref: (c_in, c_hid)   b1_ref: (1, c_hid)
    # w2_ref: (c_hid, c_out)   b2_ref: (1, c_out)      o_ref:  (tile_m, c_out)
    x = x_ref[...].astype(w1_ref.dtype)
    h = jnp.dot(x, w1_ref[...], preferred_element_type=jnp.float32)
    h = jnp.maximum(h + b1_ref[...], 0.0)
    y = jnp.dot(h.astype(w2_ref.dtype), w2_ref[...],
                preferred_element_type=jnp.float32)
    o_ref[...] = (y + b2_ref[...]).astype(o_ref.dtype)


def _mlp_kernel_chunked(x_ref, w1_ref, b1_ref, w2_ref, b2_ref, o_ref,
                        xc_ref, acc_ref):
    """num_k > 1: hidden dim chunked, f32 accumulator resident across k."""
    # x_ref:  (tile_m, c_in)        w1_ref: (c_in, tile_k)   b1_ref: (1, tile_k)
    # w2_ref: (tile_k, c_out)       b2_ref: (1, c_out)       o_ref: (tile_m, c_out)
    # xc_ref: (tile_m, c_in) bf16   acc_ref: (tile_m, c_out) f32
    k = pl.program_id(1)

    @pl.when(k == 0)
    def _init():
        acc_ref[...] = jnp.zeros_like(acc_ref)
        # Cast the (grid-invariant across k) x tile to the MXU dtype once.
        xc_ref[...] = x_ref[...].astype(xc_ref.dtype)

    h = jnp.dot(xc_ref[...], w1_ref[...], preferred_element_type=jnp.float32)
    h = jnp.maximum(h + b1_ref[...], 0.0)
    acc_ref[...] += jnp.dot(h.astype(w2_ref.dtype), w2_ref[...],
                            preferred_element_type=jnp.float32)

    @pl.when(k == pl.num_programs(1) - 1)
    def _finalize():
        o_ref[...] = (acc_ref[...] + b2_ref[...]).astype(o_ref.dtype)


# --------------------------------------------------------------------------
# Wrapper
# --------------------------------------------------------------------------
def mlp_pallas(x, w1, b1, w2, b2, *, tile_m=None, tile_k=None,
               compute_dtype=jnp.bfloat16):
    """Fused MLP. x: (..., C_in) -> (..., C_out)."""
    *lead, c_in = x.shape
    assert w1.shape[0] == c_in
    c_hid = w1.shape[1]
    c_out = w2.shape[1]
    out_dtype = x.dtype

    m = 1
    for d in lead:
        m *= d
    x2d = x.reshape(m, c_in)

    # ---- byte sizes & alignment -------------------------------------------
    cb = jnp.dtype(compute_dtype).itemsize
    xb = jnp.dtype(x.dtype).itemsize
    ob = jnp.dtype(out_dtype).itemsize
    sub = 16 if cb < 4 else 8  # sublane alignment for the M tile

    def vmem_bytes(tm, tk, with_acc, with_xcast):
        est = 0
        est += 2 * tm * c_in * xb        # x tile (double-buffered)
        est += 2 * c_in * tk * cb        # w1 block
        est += 2 * tk * 4                # b1 block (f32)
        est += 2 * tk * c_out * cb       # w2 block
        est += 2 * c_out * 4             # b2 (f32)
        est += 2 * tm * c_out * ob       # output tile
        est += tm * tk * 4               # f32 intermediate h
        if with_acc:
            est += tm * c_out * 4        # f32 accumulator scratch
        if with_xcast:
            est += tm * c_in * cb        # bf16 x-cast scratch
        return est

    # ---- generation-aware VMEM budget --------------------------------------
    vmem_cap = _vmem_capacity_bytes()
    ws_budget = min(int(0.6 * vmem_cap), 60 << 20)   # ~60 MiB v5e/v6e, ~38 MiB v7x

    # ---- token-dim tile: divisor-friendly, <= ~512 rows ---------------------
    if tile_m is None:
        n_m_target = max(1, _cdiv(m, 512))
        tile_m = _round_up(_cdiv(m, n_m_target), sub)
    tile_m = max(sub, _round_up(tile_m, sub))

    # ---- hidden-dim tile: prefer resident weights (num_k == 1) --------------
    if tile_k is None:
        if vmem_bytes(tile_m, c_hid, False, False) <= ws_budget:
            tile_k = c_hid
        else:
            # Try shrinking tile_m (>= ~128 rows) while keeping weights resident.
            tm = tile_m
            while (tm > max(sub, 128)
                   and vmem_bytes(tm, c_hid, False, False) > ws_budget):
                tm = max(_round_up(tm // 2, sub), sub)
            if vmem_bytes(tm, c_hid, False, False) <= ws_budget:
                tile_m, tile_k = tm, c_hid
            elif c_hid % 128 == 0:
                # Fallback: stream the hidden dim in chunks.
                tile_k = 128
                for cand in range(min(2048, c_hid - 128), 127, -128):
                    if (c_hid % cand == 0
                            and vmem_bytes(tile_m, cand, True, True) <= ws_budget):
                        tile_k = cand
                        break
            else:
                # Last resort: keep full hidden width, shrink tile_m hard.
                while tm > sub and vmem_bytes(tm, c_hid, False, False) > ws_budget:
                    tm = max(_round_up(tm // 2, sub), sub)
                tile_m, tile_k = tm, c_hid
    assert c_hid % tile_k == 0, "tile_k must divide hidden_channels"
    assert tile_k == c_hid or tile_k % 128 == 0, \
        "tile_k must be a multiple of 128 (or the full hidden width)"
    num_k = c_hid // tile_k

    # ---- ensure >= 2 M tiles when possible (feeds both v7x TensorCores) -----
    if _cdiv(m, tile_m) == 1 and tile_m > sub:
        tile_m = _round_up(_cdiv(m, 2), sub)

    m_pad = max(_cdiv(m, tile_m), 1) * tile_m
    if m_pad != m:
        x2d = jnp.pad(x2d, ((0, m_pad - m), (0, 0)))
    num_m_tiles = m_pad // tile_m

    # ---- operands in MXU compute dtype; biases stay f32 ---------------------
    w1c = w1.astype(compute_dtype)
    w2c = w2.astype(compute_dtype)
    b1_2d = b1.reshape(1, c_hid).astype(jnp.float32)
    b2_2d = b2.reshape(1, c_out).astype(jnp.float32)

    # ---- cost estimate (weights counted once when resident) -----------------
    flops = 2 * m_pad * (c_in * c_hid + c_hid * c_out)
    weight_stream = 1 if num_k == 1 else num_m_tiles
    bytes_accessed = (m_pad * c_in * xb
                      + weight_stream * (c_in * c_hid + c_hid * c_out) * cb
                      + c_hid * 4 + c_out * 4
                      + m_pad * c_out * ob)
    cost = pl.CostEstimate(flops=flops, transcendentals=0,
                           bytes_accessed=bytes_accessed)

    ws = vmem_bytes(tile_m, tile_k, with_acc=(num_k > 1), with_xcast=(num_k > 1))
    vmem_limit = int(min(max(int(1.2 * ws), 32 << 20), int(0.75 * vmem_cap)))

    if num_k == 1:
        grid = (num_m_tiles,)
        in_specs = [
            pl.BlockSpec((tile_m, c_in), lambda i: (i, 0)),
            pl.BlockSpec((c_in, c_hid), lambda i: (0, 0)),   # grid-invariant -> resident
            pl.BlockSpec((1, c_hid), lambda i: (0, 0)),
            pl.BlockSpec((c_hid, c_out), lambda i: (0, 0)),  # grid-invariant -> resident
            pl.BlockSpec((1, c_out), lambda i: (0, 0)),
        ]
        out_specs = pl.BlockSpec((tile_m, c_out), lambda i: (i, 0))
        scratch_shapes = []
        kernel = _mlp_kernel_fused
        dim_sem = ("parallel",)
    else:
        # TODO(synk): optionally deepen weight buffering (pl.Buffered) when the
        # streamed-weight fallback is HBM-bound on v6e.
        grid = (num_m_tiles, num_k)
        in_specs = [
            pl.BlockSpec((tile_m, c_in), lambda i, k: (i, 0)),
            pl.BlockSpec((c_in, tile_k), lambda i, k: (0, k)),
            pl.BlockSpec((1, tile_k), lambda i, k: (0, k)),
            pl.BlockSpec((tile_k, c_out), lambda i, k: (k, 0)),
            pl.BlockSpec((1, c_out), lambda i, k: (0, 0)),
        ]
        out_specs = pl.BlockSpec((tile_m, c_out), lambda i, k: (i, 0))
        scratch_shapes = [
            pltpu.VMEM((tile_m, c_in), compute_dtype),   # x cast once per M tile
            pltpu.VMEM((tile_m, c_out), jnp.float32),    # f32 accumulator
        ]
        kernel = _mlp_kernel_chunked
        dim_sem = ("parallel", "arbitrary")

    out2d = pl.pallas_call(
        kernel,
        out_shape=jax.ShapeDtypeStruct((m_pad, c_out), out_dtype),
        grid_spec=pltpu.PrefetchScalarGridSpec(
            num_scalar_prefetch=0,
            grid=grid,
            in_specs=in_specs,
            out_specs=out_specs,
            scratch_shapes=scratch_shapes,
        ),
        compiler_params=pltpu.CompilerParams(
            dimension_semantics=dim_sem,
            vmem_limit_bytes=vmem_limit,
        ),
        cost_estimate=cost,
    )(x2d, w1c, b1_2d, w2c, b2_2d)

    out2d = out2d[:m]
    return out2d.reshape(*lead, c_out)


def init_mlp_params(key, in_channels, out_channels, hidden_channels=None,
                    dtype=jnp.float32):
    """Deterministic init matching nn.Linear's U(-1/sqrt(fan_in), 1/sqrt(fan_in))."""
    if hidden_channels is None:
        hidden_channels = in_channels
    k1, k2, k3, k4 = jax.random.split(key, 4)
    bound1 = 1.0 / (in_channels ** 0.5)
    bound2 = 1.0 / (hidden_channels ** 0.5)
    # stored transposed relative to PyTorch: (in, out)
    w1 = jax.random.uniform(k1, (in_channels, hidden_channels), dtype,
                            minval=-bound1, maxval=bound1)
    b1 = jax.random.uniform(k2, (hidden_channels,), dtype,
                            minval=-bound1, maxval=bound1)
    w2 = jax.random.uniform(k3, (hidden_channels, out_channels), dtype,
                            minval=-bound2, maxval=bound2)
    b2 = jax.random.uniform(k4, (out_channels,), dtype,
                            minval=-bound2, maxval=bound2)
    return w1, b1, w2, b2


if __name__ == "__main__":
    key = jax.random.PRNGKey(0)
    k_x, k_p = jax.random.split(key)

    batch, seq = 2, 8
    in_channels, hidden_channels, out_channels = 32, 32, 16
    # NOTE: real SSAST widths (768 / 3072) are 128-multiples and lane-dense;
    # these demo widths are intentionally tiny.

    x = jax.random.normal(k_x, (batch, seq, in_channels), dtype=jnp.float32)
    w1, b1, w2, b2 = init_mlp_params(k_p, in_channels, out_channels,
                                     hidden_channels)

    out = mlp_pallas(x, w1, b1, w2, b2)
    out = jax.block_until_ready(out)
    assert out.shape == (batch, seq, out_channels)

    # Mixed-precision reference matching the kernel's bf16-operand / f32-acc path.
    x2d = x.reshape(-1, in_channels)
    h_ref = jnp.maximum(
        jnp.dot(x2d.astype(jnp.bfloat16), w1.astype(jnp.bfloat16),
                preferred_element_type=jnp.float32) + b1, 0.0)
    ref_mixed = (jnp.dot(h_ref.astype(jnp.bfloat16), w2.astype(jnp.bfloat16),
                         preferred_element_type=jnp.float32)
                 + b2).reshape(batch, seq, out_channels)
    assert jnp.allclose(out, ref_mixed, atol=2e-3, rtol=2e-3), \
        float(jnp.max(jnp.abs(out - ref_mixed)))

    # Looser sanity check against the pure-f32 reference.
    ref_f32 = jnp.maximum(x @ w1 + b1, 0.0) @ w2 + b2
    assert jnp.allclose(out, ref_f32, atol=5e-2, rtol=5e-2), \
        float(jnp.max(jnp.abs(out - ref_f32)))

    print("KERNEL_OK")
</pallas_src>

<mosaic_0001>
module attributes {stable_mosaic.version = 11 : i64} {
  func.func @_mlp_kernel_fused(%arg0: i32, %arg1: memref<16x32xf32, #tpu.memory_space<vmem>>, %arg2: memref<32x32xbf16, #tpu.memory_space<vmem>>, %arg3: memref<1x32xf32, #tpu.memory_space<vmem>>, %arg4: memref<32x16xbf16, #tpu.memory_space<vmem>>, %arg5: memref<1x16xf32, #tpu.memory_space<vmem>>, %arg6: memref<16x16xf32, #tpu.memory_space<vmem>>) attributes {dimension_semantics = [#tpu.dimension_semantics<parallel>], iteration_bounds = array<i64: 1>, scalar_prefetch = 0 : i64, scratch_operands = 0 : i64, tpu.core_type = #tpu.core_type<tc>, window_params = [{transform_indices = @transform_0, window_bounds = array<i64: 16, 32>}, {pipeline_mode = #tpu.pipeline_mode<synchronous>, transform_indices = @transform_1, window_bounds = array<i64: 32, 32>}, {pipeline_mode = #tpu.pipeline_mode<synchronous>, transform_indices = @transform_2, window_bounds = array<i64: 1, 32>}, {pipeline_mode = #tpu.pipeline_mode<synchronous>, transform_indices = @transform_3, window_bounds = array<i64: 32, 16>}, {pipeline_mode = #tpu.pipeline_mode<synchronous>, transform_indices = @transform_4, window_bounds = array<i64: 1, 16>}, {transform_indices = @transform_5, window_bounds = array<i64: 16, 16>}]} {
    %c0 = arith.constant 0 : index
    %c0_0 = arith.constant 0 : index
    %0 = vector.load %arg1[%c0, %c0_0] : memref<16x32xf32, #tpu.memory_space<vmem>>, vector<16x32xf32>
    %1 = arith.truncf %0 : vector<16x32xf32> to vector<16x32xbf16>
    %c0_1 = arith.constant 0 : index
    %c0_2 = arith.constant 0 : index
    %2 = vector.load %arg2[%c0_1, %c0_2] : memref<32x32xbf16, #tpu.memory_space<vmem>>, vector<32x32xbf16>
    %cst = arith.constant dense<0.000000e+00> : vector<16x32xf32>
    %3 = tpu.matmul %1, %2, %cst {dimension_numbers = #tpu.dot_dimension_numbers<[1], [0], [0], [1], [0, 0, 1, 1], [], []>} : vector<16x32xbf16>, vector<32x32xbf16>, vector<16x32xf32> -> vector<16x32xf32>
    %c0_3 = arith.constant 0 : index
    %c0_4 = arith.constant 0 : index
    %4 = vector.load %arg3[%c0_3, %c0_4] : memref<1x32xf32, #tpu.memory_space<vmem>>, vector<1x32xf32>
    %5 = vector.broadcast %4 : vector<1x32xf32> to vector<16x32xf32>
    %6 = arith.addf %3, %5 : vector<16x32xf32>
    %cst_5 = arith.constant 0.000000e+00 : f32
    %7 = vector.broadcast %cst_5 : f32 to vector<16x32xf32>
    %8 = arith.maximumf %6, %7 : vector<16x32xf32>
    %9 = arith.truncf %8 : vector<16x32xf32> to vector<16x32xbf16>
    %c0_6 = arith.constant 0 : index
    %c0_7 = arith.constant 0 : index
    %10 = vector.load %arg4[%c0_6, %c0_7] : memref<32x16xbf16, #tpu.memory_space<vmem>>, vector<32x16xbf16>
    %cst_8 = arith.constant dense<0.000000e+00> : vector<16x16xf32>
    %11 = tpu.matmul %9, %10, %cst_8 {dimension_numbers = #tpu.dot_dimension_numbers<[1], [0], [0], [1], [0, 0, 1, 1], [], []>} : vector<16x32xbf16>, vector<32x16xbf16>, vector<16x16xf32> -> vector<16x16xf32>
    %c0_9 = arith.constant 0 : index
    %c0_10 = arith.constant 0 : index
    %12 = vector.load %arg5[%c0_9, %c0_10] : memref<1x16xf32, #tpu.memory_space<vmem>>, vector<1x16xf32>
    %13 = vector.broadcast %12 : vector<1x16xf32> to vector<16x16xf32>
    %14 = arith.addf %11, %13 : vector<16x16xf32>
    %c0_11 = arith.constant 0 : index
    %c0_12 = arith.constant 0 : index
    %15 = vector.load %arg6[%c0_11, %c0_12] : memref<16x16xf32, #tpu.memory_space<vmem>>, vector<16x16xf32>
    tpu.vector_store %arg6[%c0_11, %c0_12], %14 {strides = array<i32>} : memref<16x16xf32, #tpu.memory_space<vmem>>, vector<16x16xf32>,
    return
  }
  func.func @transform_0(%arg0: i32) -> (i32, i32) {
    %c0_i32 = arith.constant 0 : i32
    %c0_i32_0 = arith.constant 0 : i32
    return %arg0, %c0_i32 : i32, i32
  }
  func.func @transform_1(%arg0: i32) -> (i32, i32) {
    %c0_i32 = arith.constant 0 : i32
    %c0_i32_0 = arith.constant 0 : i32
    %c0_i32_1 = arith.constant 0 : i32
    return %c0_i32, %c0_i32_0 : i32, i32
  }
  func.func @transform_2(%arg0: i32) -> (i32, i32) {
    %c0_i32 = arith.constant 0 : i32
    %c0_i32_0 = arith.constant 0 : i32
    %c0_i32_1 = arith.constant 0 : i32
    return %c0_i32, %c0_i32_0 : i32, i32
  }
  func.func @transform_3(%arg0: i32) -> (i32, i32) {
    %c0_i32 = arith.constant 0 : i32
    %c0_i32_0 = arith.constant 0 : i32
    %c0_i32_1 = arith.constant 0 : i32
    return %c0_i32, %c0_i32_0 : i32, i32
  }
  func.func @transform_4(%arg0: i32) -> (i32, i32) {
    %c0_i32 = arith.constant 0 : i32
    %c0_i32_0 = arith.constant 0 : i32
    %c0_i32_1 = arith.constant 0 : i32
    return %c0_i32, %c0_i32_0 : i32, i32
  }
  func.func @transform_5(%arg0: i32) -> (i32, i32) {
    %c0_i32 = arith.constant 0 : i32
    %c0_i32_0 = arith.constant 0 : i32
    return %arg0, %c0_i32 : i32, i32
  }
}

</mosaic_0001>

<llo_original>
// kernel: tpu_custom_call.1
$region0: #{tpu_custom_call.1}
  #allocation0 [shape = 'u32[]', space=smem, size = 0x4, offset = 0x4, fixed_abs, tag = 'smem constant byte address 0x4 - core index']
  #allocation1 [shape = 'u32[144,128]{1,0:T(1,128)}', space=vmem, size = 0x12000, scoped, tag = 'internal scratch']
  %s0 = inlined_call_operand.vmem [shape: f32[16,32], index: 0, kind: input, shape index: {}]
  %s1 = inlined_call_operand.hbm [shape: bf16[32,32], index: 1, kind: input, shape index: {}]
  %s2 = inlined_call_operand.vmem [shape: f32[1,32], index: 2, kind: input, shape index: {}]
  %s3 = inlined_call_operand.vmem [shape: bf16[32,16], index: 3, kind: input, shape index: {}]
  %s4 = inlined_call_operand.vmem [shape: f32[1,16], index: 4, kind: input, shape index: {}]
  %s5 = inlined_call_operand.hbm [shape: f32[16,16], index: 5, kind: output, shape index: {}]
  %s6 = sld [smem:[#allocation0]]
  $region34: #{tpu_custom_call.1} parent=0
    _
  %s8 = ssub.s32 1, %s6
  %s9 = scalar_select 0, %s8, %s6
  $region1: #{tpu_custom_call.1} parent=0
    #allocation2 [shape = 'u8[8192]{0}', space=vmem, size = 0x2000, scoped, tag = 'input window, operand 1, single buffered']
    #allocation3 [shape = 's32[1]{0}', space=sflag, size = 0x4, scoped, tag = 'scoped memory for tpu_custom_call.1']
    #allocation4 [shape = 's32[1]{0}', space=sflag, size = 0x4, scoped, tag = 'scoped memory for tpu_custom_call.1']
    #allocation5 [shape = 'u8[8192]{0}', space=vmem, size = 0x2000, scoped, tag = 'output window, operand 0, single buffered']
    %10 = vsyncpa [#allocation3], 0
    %11 = vsyncpa [#allocation4], 0
    // Predicated region
    $region2: #{tpu_custom_call.1} parent=1 // pred_check
      _
    $region3: #{tpu_custom_call.1} parent=1 // pred_check_branch
      %13 = sbr.rel (0) target = $region5
    $region4: #{tpu_custom_call.1} parent=1 // pred_region
      _
    $region5: #{tpu_custom_call.1} parent=1 // pred_fallthru
      _
    // Predicated region
    $region6: #{tpu_custom_call.1} parent=1 // pred_check
      _
    $region7: #{tpu_custom_call.1} parent=1 // pred_check_branch
      %15 = sbr.rel (0) target = $region9
    $region8: #{tpu_custom_call.1} parent=1 // pred_region
      %s17 = ssub.s32 256, 256
      %18 = vsyncadd [#allocation3], %s17
      %s19 = sshll.u32 [#allocation2], 4
      %s20 = int_to_ptr.vmem [resolvable:$true] %s19
      %25 = dma.hbm_to_vmem [thread:$0]  %s1, 256, %s20, [#allocation3], 64, 64, 4
    $region9: #{tpu_custom_call.1} parent=1 // pred_fallthru
      _
    // Predicated region
    $region10: #{tpu_custom_call.1} parent=1 // pred_check
      _
    $region11: #{tpu_custom_call.1} parent=1 // pred_check_branch
      %27 = sbr.rel (0) target = $region13
    $region12: #{tpu_custom_call.1} parent=1 // pred_region
      _
    $region13: #{tpu_custom_call.1} parent=1 // pred_fallthru
      _
    // Predicated region
    $region14: #{tpu_custom_call.1} parent=1 // pred_check
      _
    $region15: #{tpu_custom_call.1} parent=1 // pred_check_branch
      %29 = sbr.rel (0) target = $region17
    $region16: #{tpu_custom_call.1} parent=1 // pred_region
      _
    $region17: #{tpu_custom_call.1} parent=1 // pred_fallthru
      _
    // Predicated region
    $region18: #{tpu_custom_call.1} parent=1 // pred_check
      _
    $region19: #{tpu_custom_call.1} parent=1 // pred_check_branch
      %31 = sbr.rel (0) target = $region21
    $region20: #{tpu_custom_call.1} parent=1 // pred_region
      _
    $region21: #{tpu_custom_call.1} parent=1 // pred_fallthru
      _
    // Predicated region
    $region22: #{tpu_custom_call.1} parent=1 // pred_check
      _
    $region23: #{tpu_custom_call.1} parent=1 // pred_check_branch
      %33 = sbr.rel (0) target = $region25
    $region24: #{tpu_custom_call.1} parent=1 // pred_region
      %34 = dma.done [#allocation3], 256
    $region25: #{tpu_custom_call.1} parent=1 // pred_fallthru
      _
    %v36 = vld [vmem:[%s0] sm:$0xff]
    %v37 = vld [vmem:[%s0 + $0x8] sm:$0xff]
    %v38 = vpack.c.bf16 %v37, %v36
    %v39 = vld [vmem:[#allocation2] sm:$0xf]
    %v40 = vld [vmem:[#allocation2 + $0x4] sm:$0xf]
    %v41 = vld [vmem:[#allocation2 + $0x8] sm:$0xf]
    %v42 = vld [vmem:[#allocation2 + $0xc] sm:$0xf]
    %v43 = vld [vmem:[%s2] sm:$0x1]
    %v45 = vlaneseq
    %v46 = vshrl.u32 %v45, 7
    %v47 = vsub.s32 0, %v46
    %v48 = vrot.slane %v43, %v47
    %v54 = vunpack.c.l.b16 %v39
    %v55 = vunpack.c.l.b16 %v40
    %v56 = vunpack.c.l.b16 %v41
    %v57 = vunpack.c.l.b16 %v42
    %v58 = vpack.c.b16 %v55, %v54
    %v59 = vpack.c.b16 %v57, %v56
    %vm62 = vcmask 261120
    %v64 = vsel %vm62, %v38, 0
    %66 = vmatprep.subr.bf16.mxu0 0
    %67 = vmatpush1.bf16.msra.mxu0 %v58
    %68 = vmatprep.subr.bf16.mxu0 0
    %69 = vmatpush1.bf16.msra.mxu0 %v59
    %70 = vmatprep.subr.bf16.mxu0 0
    %71 = vmatpush1.bf16.msra.mxu0 0
    %72 = vmatprep.subr.bf16.mxu0 0
    %73 = vmatpush1.bf16.msra.mxu0 0
    %74 = vmatprep.subr.bf16.mxu0 0
    %75 = vmatpush1.bf16.msra.mxu0 0
    %76 = vmatprep.subr.bf16.mxu0 0
    %77 = vmatpush1.bf16.msra.mxu0 0
    %78 = vmatprep.subr.bf16.mxu0 0
    %79 = vmatpush1.bf16.msra.mxu0 0
    %80 = vmatprep.subr.bf16.mxu0 0
    %81 = vmatpush1.bf16.msra.mxu0 0
    %82 = vmatprep.subr.bf16.mxu0 0
    %83 = vmatpush1.bf16.msra.mxu0 0
    %84 = vmatprep.subr.bf16.mxu0 0
    %85 = vmatpush1.bf16.msra.mxu0 0
    %86 = vmatprep.subr.bf16.mxu0 0
    %87 = vmatpush1.bf16.msra.mxu0 0
    %88 = vmatprep.subr.bf16.mxu0 0
    %89 = vmatpush1.bf16.msra.mxu0 0
    %90 = vmatprep.subr.bf16.mxu0 0
    %91 = vmatpush1.bf16.msra.mxu0 0
    %92 = vmatprep.subr.bf16.mxu0 0
    %93 = vmatpush1.bf16.msra.mxu0 0
    %94 = vmatprep.subr.bf16.mxu0 0
    %95 = vmatpush1.bf16.msra.mxu0 0
    %96 = vmatprep.subr.bf16.mxu0 0
    %97 = vmatpush1.bf16.msra.mxu0 0
    %98 = vmatprep.mubr.bf16.mxu0 0
    %99 = vmatmul.mubr.bf16.gmra.mrb[0].mxu0 %v64
    %v100 = vpop.f32.mrb[0].mxu0
    %v101 = vadd.f32 %v48, %v100
    %v102 = vpop.f32.mrb[0].mxu0
    %v103 = vpop.f32.mrb[0].mxu0
    %v104 = vadd.f32 %v48, %v103
    %v105 = vpop.f32.mrb[0].mxu0
    %106 = vdwg.mxu0
    %v107 = vmax.f32 %v101, 0.0
    %v108 = vmax.f32 %v104, 0.0
    %v109 = vpack.c.bf16 %v108, %v107
    %v110 = vld [vmem:[%s3] sm:$0xf]
    %v111 = vld [vmem:[%s3 + $0x4] sm:$0xf]
    %v112 = vld [vmem:[%s3 + $0x8] sm:$0xf]
    %v113 = vld [vmem:[%s3 + $0xc] sm:$0xf]
    %v114 = vld [vmem:[%s4] sm:$0x1]
    %v116 = vlaneseq
    %v117 = vshrl.u32 %v116, 7
    %v118 = vsub.s32 0, %v117
    %v119 = vrot.slane %v114, %v118
    %v125 = vunpack.c.l.b16 %v110
    %v126 = vunpack.c.l.b16 %v111
    %v127 = vunpack.c.l.b16 %v112
    %v128 = vunpack.c.l.b16 %v113
    %v129 = vpack.c.b16 %v126, %v125
    %v130 = vpack.c.b16 %v128, %v127
    %v134 = vsel %vm62, %v109, 0
    %136 = vmatprep.subr.bf16.mxu0 0
    %137 = vmatpush1.bf16.msra.mxu0 %v129
    %138 = vmatprep.subr.bf16.mxu0 0
    %139 = vmatpush1.bf16.msra.mxu0 %v130
    %140 = vmatprep.subr.bf16.mxu0 0
    %141 = vmatpush1.bf16.msra.mxu0 0
    %142 = vmatprep.subr.bf16.mxu0 0
    %143 = vmatpush1.bf16.msra.mxu0 0
    %144 = vmatprep.subr.bf16.mxu0 0
    %145 = vmatpush1.bf16.msra.mxu0 0
    %146 = vmatprep.subr.bf16.mxu0 0
    %147 = vmatpush1.bf16.msra.mxu0 0
    %148 = vmatprep.subr.bf16.mxu0 0
    %149 = vmatpush1.bf16.msra.mxu0 0
    %150 = vmatprep.subr.bf16.mxu0 0
    %151 = vmatpush1.bf16.msra.mxu0 0
    %152 = vmatprep.subr.bf16.mxu0 0
    %153 = vmatpush1.bf16.msra.mxu0 0
    %154 = vmatprep.subr.bf16.mxu0 0
    %155 = vmatpush1.bf16.msra.mxu0 0
    %156 = vmatprep.subr.bf16.mxu0 0
    %157 = vmatpush1.bf16.msra.mxu0 0
    %158 = vmatprep.subr.bf16.mxu0 0
    %159 = vmatpush1.bf16.msra.mxu0 0
    %160 = vmatprep.subr.bf16.mxu0 0
    %161 = vmatpush1.bf16.msra.mxu0 0
    %162 = vmatprep.subr.bf16.mxu0 0
    %163 = vmatpush1.bf16.msra.mxu0 0
    %164 = vmatprep.subr.bf16.mxu0 0
    %165 = vmatpush1.bf16.msra.mxu0 0
    %166 = vmatprep.subr.bf16.mxu0 0
    %167 = vmatpush1.bf16.msra.mxu0 0
    %168 = vmatprep.mubr.bf16.mxu0 0
    %169 = vmatmul.mubr.bf16.gmra.mrb[0].mxu0 %v134
    %v170 = vpop.f32.mrb[0].mxu0
    %v171 = vadd.f32 %v119, %v170
    %v172 = vpop.f32.mrb[0].mxu0
    %v173 = vpop.f32.mrb[0].mxu0
    %v174 = vadd.f32 %v119, %v173
    %v175 = vpop.f32.mrb[0].mxu0
    %176 = vdwg.mxu0
    %vm177 = vcmask 130048
    %178 = vst.msk [vmem:[#allocation5] sm:$0xff] %vm177, %v171
    %179 = vst.msk [vmem:[#allocation5 + $0x8] sm:$0xff] %vm177, %v174
    // Predicated region
    $region26: #{tpu_custom_call.1} parent=1 // pred_check
      _
    $region27: #{tpu_custom_call.1} parent=1 // pred_check_branch
      %181 = sbr.rel (0) target = $region29
    $region28: #{tpu_custom_call.1} parent=1 // pred_region
      %s183 = ssub.s32 256, 256
      %184 = vsyncadd [#allocation4], %s183
      %s185 = sshll.u32 [#allocation5], 4
      %s186 = int_to_ptr.vmem [resolvable:$true] %s185
      %191 = dma.vmem_to_hbm [thread:$0]  %s186, 256, %s5, [#allocation4], 128, 128, 8
    $region29: #{tpu_custom_call.1} parent=1 // pred_fallthru
      _
    // Predicated region
    $region30: #{tpu_custom_call.1} parent=1 // pred_check
      _
    $region31: #{tpu_custom_call.1} parent=1 // pred_check_branch
      %193 = sbr.rel (0) target = $region33
    $region32: #{tpu_custom_call.1} parent=1 // pred_region
      %194 = dma.done [#allocation4], 256
    $region33: #{tpu_custom_call.1} parent=1 // pred_fallthru
      _
    %195 = vsyncpa [#allocation3], 1
    %196 = vsyncpa [#allocation4], 1

</llo_original>
